<compile_context>
chip_gen: v7x
topology: tpu7x:2x2x1
jax: 0.10.0
libtpu: 0.0.40
codegen_flags: <defaults>
</compile_context>

<pallas_src>
import functools

import jax
import jax.numpy as jnp
from jax import lax
from jax.experimental import pallas as pl
from jax.experimental.pallas import tpu as pltpu


# ---------------------------------------------------------------------------
# Kernel
# ---------------------------------------------------------------------------
def _fused_mlp_kernel(x_ref, w1_ref, b1_ref, w2_ref, b2_ref, o_ref,
                      *, num_layers):
    """Fused residual MLP stack on one (C, tm) activation tile.

    x_ref : (C, tm)        activation tile, pixels on the lane axis
    w1_ref: (L, mid, C)    conv1 1x1 weights (PyTorch (out, in) layout)
    b1_ref: (L, mid, 1)
    w2_ref: (L, C, mid)    conv2 1x1 weights
    b2_ref: (L, C, 1)
    o_ref : (C, tm)
    """
    op_dtype = x_ref.dtype                   # MXU operand dtype == I/O dtype
    x = x_ref[...].astype(jnp.float32)       # f32 residual accumulator

    def one_layer(xc, w1, b1, w2, b2):
        xi = xc.astype(op_dtype)             # no f32 upcast of MXU operands
        h = jnp.dot(w1, xi, preferred_element_type=jnp.float32)
        h = h + b1.astype(jnp.float32)
        h = jnp.where(h >= 0.0, h, 0.1 * h)  # leaky_relu(., 0.1)
        y = jnp.dot(w2, h.astype(op_dtype), preferred_element_type=jnp.float32)
        y = y + b2.astype(jnp.float32)
        return xc + y                        # residual, accumulated in f32

    if num_layers <= 4:
        for l in range(num_layers):          # static unroll (small stacks)
            x = one_layer(x, w1_ref[l], b1_ref[l], w2_ref[l], b2_ref[l])
    else:
        # Deeper stacks: dynamic layer loop bounds vreg live ranges.
        x = lax.fori_loop(
            0, num_layers,
            lambda l, xc: one_layer(xc, w1_ref[l], b1_ref[l],
                                    w2_ref[l], b2_ref[l]),
            x)

    o_ref[...] = x.astype(o_ref.dtype)


# ---------------------------------------------------------------------------
# Tile / VMEM planning (generation-aware)
# ---------------------------------------------------------------------------
def _vmem_capacity_bytes():
    try:
        cap = int(pltpu.get_tpu_info().vmem_capacity_bytes)
        if cap > 0:
            return cap
    except Exception:
        pass
    return 64 << 20            # conservative default: v7x per-TensorCore VMEM


def _vmem_estimate(c_dim, mid, tm, num_layers, io_itemsize, wt_itemsize):
    """Activation I/O (double-buffered) + resident weights + live f32 temps."""
    act_io = 2 * 2 * c_dim * tm * io_itemsize
    weights = 2 * num_layers * (2 * c_dim * mid + mid + c_dim) * wt_itemsize
    intermed = (2 * c_dim + mid) * tm * 4          # live f32 x, h, y
    return act_io + weights + intermed + (2 << 20)  # compiler headroom


def _plan_tiles(hw, c_dim, mid, n_batch, num_layers,
                io_itemsize, wt_itemsize, cap):
    """Pick (tm, hw_pad): tm a multiple of 128 dividing hw_pad (or the full
    extent), sized to a ~2 MiB activation block, with >= 2 (and even) total
    grid steps when possible, and fitting the per-core VMEM estimate."""
    if hw % 128 == 0:
        hw_pad = hw
    elif c_dim * hw * (io_itemsize + 12) <= (4 << 20):
        return hw, hw            # small ragged extent: one full-extent block
    else:
        hw_pad = pl.cdiv(hw, 128) * 128   # pad copy only in the ragged case

    budget = 2 << 20
    target = max(128, (budget // max(1, c_dim * io_itemsize)) // 128 * 128)
    target = min(hw_pad, target)
    tm = 128
    for d in range(target, 127, -128):
        if hw_pad % d == 0:
            tm = d
            break

    # >= 2 total grid steps, even if possible (v7x shards the grid over 2 TCs).
    steps = n_batch * (hw_pad // tm)
    if (steps < 2 or steps % 2 == 1) and tm % 256 == 0 and hw_pad % (tm // 2) == 0:
        tm //= 2

    # Shrink until the (intermediate-inclusive) VMEM estimate fits comfortably.
    while (_vmem_estimate(c_dim, mid, tm, num_layers, io_itemsize, wt_itemsize)
           > int(0.7 * cap)
           and tm % 256 == 0 and hw_pad % (tm // 2) == 0):
        tm //= 2
    return tm, hw_pad


# ---------------------------------------------------------------------------
# pallas_call wrapper
# ---------------------------------------------------------------------------
def _fused_call(x3d, w1s, b1s, w2s, b2s, *, tm, vmem_limit):
    n_batch, c_dim, hw_pad = x3d.shape
    num_layers, mid, _ = w1s.shape

    kernel = functools.partial(_fused_mlp_kernel, num_layers=num_layers)

    act_spec = pl.BlockSpec((pl.Squeezed(), c_dim, tm), lambda nb, i: (nb, 0, i))
    # Constant-index weight/bias blocks: Pallas keeps the same block resident
    # across grid steps (no per-step re-fetch).
    w1_spec = pl.BlockSpec((num_layers, mid, c_dim), lambda nb, i: (0, 0, 0))
    b1_spec = pl.BlockSpec((num_layers, mid, 1), lambda nb, i: (0, 0, 0))
    w2_spec = pl.BlockSpec((num_layers, c_dim, mid), lambda nb, i: (0, 0, 0))
    b2_spec = pl.BlockSpec((num_layers, c_dim, 1), lambda nb, i: (0, 0, 0))

    return pl.pallas_call(
        kernel,
        out_shape=jax.ShapeDtypeStruct((n_batch, c_dim, hw_pad), x3d.dtype),
        grid=(n_batch, hw_pad // tm),
        in_specs=[act_spec, w1_spec, b1_spec, w2_spec, b2_spec],
        out_specs=act_spec,
        input_output_aliases={0: 0},
        compiler_params=pltpu.CompilerParams(
            dimension_semantics=("parallel", "parallel"),
            vmem_limit_bytes=int(vmem_limit)),
    )(x3d, w1s, b1s, w2s, b2s)


@functools.partial(jax.jit, static_argnames=("tm",))
def mlp_blocks_forward(x_nchw, w1s, b1s, w2s, b2s, tm=None):
    """MLPBlocks.forward: for m in layers: x = x + m(x)   (NCHW in, NCHW out)."""
    n, c, h, w = x_nchw.shape
    hw = h * w
    num_layers, mid, _ = w1s.shape
    io_item = jnp.dtype(x_nchw.dtype).itemsize
    wt_item = jnp.dtype(w1s.dtype).itemsize
    cap = _vmem_capacity_bytes()

    if tm is None:
        tm, hw_pad = _plan_tiles(hw, c, mid, n, num_layers,
                                 io_item, wt_item, cap)
    else:
        hw_pad = pl.cdiv(hw, tm) * tm

    # NCHW -> (N, C, HW) is a free reshape (no transpose, no extra HBM pass);
    # image pixels land directly on the 128-wide lane axis.
    x3d = x_nchw.reshape(n, c, hw)
    if hw_pad != hw:
        # Ragged tail only: padded pixels compute garbage on a temporary
        # buffer and are sliced off below (never written to caller memory).
        x3d = jnp.pad(x3d, ((0, 0), (0, 0), (0, hw_pad - hw)))

    needed = _vmem_estimate(c, mid, tm, num_layers, io_item, wt_item)
    vmem_limit = min(cap, max(needed + (8 << 20), 32 << 20))

    out3d = _fused_call(x3d, w1s, b1s, w2s, b2s, tm=tm, vmem_limit=vmem_limit)

    if hw_pad != hw:
        out3d = out3d[:, :, :hw]
    return out3d.reshape(n, c, h, w)


# ---------------------------------------------------------------------------
# Params (PyTorch Conv2d 1x1 layout, squeezed to matmul form)
# ---------------------------------------------------------------------------
def init_mlp_blocks_params(key, in_channels, mlp_ratio=2, num_layers=2,
                           dtype=jnp.float32):
    """Per layer: w1 (mid, C), b1 (mid, 1), w2 (C, mid), b2 (C, 1),
    with mid = int(in_channels * mlp_ratio * 1.0)."""
    mid = int(in_channels * mlp_ratio * 1.0)
    layers = []
    for _ in range(num_layers):
        k1, k2, k3, k4, key = jax.random.split(key, 5)
        s1 = (2.0 / in_channels) ** 0.5
        s2 = (2.0 / mid) ** 0.5
        w1 = (jax.random.normal(k1, (mid, in_channels)) * s1).astype(dtype)
        b1 = (jax.random.normal(k2, (mid, 1)) * 0.01).astype(dtype)
        w2 = (jax.random.normal(k3, (in_channels, mid)) * s2).astype(dtype)
        b2 = (jax.random.normal(k4, (in_channels, 1)) * 0.01).astype(dtype)
        layers.append((w1, b1, w2, b2))
    return layers


def stack_params(layers):
    w1s = jnp.stack([p[0] for p in layers])
    b1s = jnp.stack([p[1] for p in layers])
    w2s = jnp.stack([p[2] for p in layers])
    b2s = jnp.stack([p[3] for p in layers])
    return w1s, b1s, w2s, b2s


# ---------------------------------------------------------------------------
# Pure-JAX reference
# ---------------------------------------------------------------------------
def _reference_forward(x_nchw, layers):
    x = x_nchw.astype(jnp.float32)
    for (w1, b1, w2, b2) in layers:
        h = jnp.einsum("oc,nchw->nohw", w1.astype(jnp.float32), x)
        h = h + b1[:, 0][None, :, None, None]
        h = jnp.where(h >= 0, h, 0.1 * h)
        y = jnp.einsum("co,nohw->nchw", w2.astype(jnp.float32), h)
        y = y + b2[:, 0][None, :, None, None]
        x = x + y
    return x


if __name__ == "__main__":
    key = jax.random.PRNGKey(0)
    k_x, k_p = jax.random.split(key)

    N, C, H, W = 2, 4, 16, 16           # small NCHW input, like the PyTorch module
    x = jax.random.normal(k_x, (N, C, H, W), dtype=jnp.float32)

    layers = init_mlp_blocks_params(k_p, in_channels=C, mlp_ratio=2, num_layers=2)
    w1s, b1s, w2s, b2s = stack_params(layers)

    # HW = 256 -> tm = 256, grid (N=2, 1) = 2 parallel steps.
    out = mlp_blocks_forward(x, w1s, b1s, w2s, b2s)
    out = jax.block_until_ready(out)

    ref = _reference_forward(x, layers)
    assert out.shape == (N, C, H, W), out.shape
    max_err = float(jnp.max(jnp.abs(out - ref)))
    assert jnp.allclose(out, ref, atol=1e-4, rtol=1e-4), max_err

    print("KERNEL_OK")
</pallas_src>

<mosaic_0001>
module attributes {stable_mosaic.version = 11 : i64} {
  func.func @_fused_mlp_kernel(%arg0: i32, %arg1: i32, %arg2: memref<1x4x256xf32, #tpu.memory_space<vmem>>, %arg3: memref<2x8x4xf32, #tpu.memory_space<vmem>>, %arg4: memref<2x8x1xf32, #tpu.memory_space<vmem>>, %arg5: memref<2x4x8xf32, #tpu.memory_space<vmem>>, %arg6: memref<2x4x1xf32, #tpu.memory_space<vmem>>, %arg7: memref<1x4x256xf32, #tpu.memory_space<vmem>>) attributes {dimension_semantics = [#tpu.dimension_semantics<parallel>, #tpu.dimension_semantics<parallel>], iteration_bounds = array<i64: 2, 1>, scalar_prefetch = 0 : i64, scratch_operands = 0 : i64, tpu.core_type = #tpu.core_type<tc>, window_params = [{transform_indices = @transform_0, window_bounds = array<i64: 1, 4, 256>}, {pipeline_mode = #tpu.pipeline_mode<synchronous>, transform_indices = @transform_1, window_bounds = array<i64: 2, 8, 4>}, {pipeline_mode = #tpu.pipeline_mode<synchronous>, transform_indices = @transform_2, window_bounds = array<i64: 2, 8, 1>}, {pipeline_mode = #tpu.pipeline_mode<synchronous>, transform_indices = @transform_3, window_bounds = array<i64: 2, 4, 8>}, {pipeline_mode = #tpu.pipeline_mode<synchronous>, transform_indices = @transform_4, window_bounds = array<i64: 2, 4, 1>}, {transform_indices = @transform_5, window_bounds = array<i64: 1, 4, 256>}]} {
    %c0 = arith.constant 0 : index
    %c0_0 = arith.constant 0 : index
    %c0_1 = arith.constant 0 : index
    %0 = vector.load %arg2[%c0, %c0_0, %c0_1] : memref<1x4x256xf32, #tpu.memory_space<vmem>>, vector<1x4x256xf32>
    %1 = vector.shape_cast %0 : vector<1x4x256xf32> to vector<4x256xf32>
    %c0_2 = arith.constant 0 : index
    %c0_3 = arith.constant 0 : index
    %c0_4 = arith.constant 0 : index
    %2 = vector.load %arg3[%c0_2, %c0_3, %c0_4] : memref<2x8x4xf32, #tpu.memory_space<vmem>>, vector<1x8x4xf32>
    %3 = vector.shape_cast %2 : vector<1x8x4xf32> to vector<8x4xf32>
    %c0_5 = arith.constant 0 : index
    %c0_6 = arith.constant 0 : index
    %c0_7 = arith.constant 0 : index
    %4 = vector.load %arg4[%c0_5, %c0_6, %c0_7] : memref<2x8x1xf32, #tpu.memory_space<vmem>>, vector<1x8x1xf32>
    %5 = vector.shape_cast %4 : vector<1x8x1xf32> to vector<8x1xf32>
    %c0_8 = arith.constant 0 : index
    %c0_9 = arith.constant 0 : index
    %c0_10 = arith.constant 0 : index
    %6 = vector.load %arg5[%c0_8, %c0_9, %c0_10] : memref<2x4x8xf32, #tpu.memory_space<vmem>>, vector<1x4x8xf32>
    %7 = vector.shape_cast %6 : vector<1x4x8xf32> to vector<4x8xf32>
    %c0_11 = arith.constant 0 : index
    %c0_12 = arith.constant 0 : index
    %c0_13 = arith.constant 0 : index
    %8 = vector.load %arg6[%c0_11, %c0_12, %c0_13] : memref<2x4x1xf32, #tpu.memory_space<vmem>>, vector<1x4x1xf32>
    %9 = vector.shape_cast %8 : vector<1x4x1xf32> to vector<4x1xf32>
    %cst = arith.constant dense<0.000000e+00> : vector<8x256xf32>
    %10 = tpu.matmul %3, %1, %cst {dimension_numbers = #tpu.dot_dimension_numbers<[1], [0], [0], [1], [0, 0, 1, 1], [], []>} : vector<8x4xf32>, vector<4x256xf32>, vector<8x256xf32> -> vector<8x256xf32>
    %11 = vector.broadcast %5 : vector<8x1xf32> to vector<8x256xf32>
    %12 = arith.addf %10, %11 : vector<8x256xf32>
    %cst_14 = arith.constant 0.000000e+00 : f32
    %13 = vector.broadcast %cst_14 : f32 to vector<8x256xf32>
    %14 = arith.cmpf oge, %12, %13 : vector<8x256xf32>
    %cst_15 = arith.constant 1.000000e-01 : f32
    %15 = vector.broadcast %cst_15 : f32 to vector<8x256xf32>
    %16 = arith.mulf %15, %12 : vector<8x256xf32>
    %17 = arith.select %14, %12, %16 : vector<8x256xi1>, vector<8x256xf32>
    %cst_16 = arith.constant dense<0.000000e+00> : vector<4x256xf32>
    %18 = tpu.matmul %7, %17, %cst_16 {dimension_numbers = #tpu.dot_dimension_numbers<[1], [0], [0], [1], [0, 0, 1, 1], [], []>} : vector<4x8xf32>, vector<8x256xf32>, vector<4x256xf32> -> vector<4x256xf32>
    %19 = vector.broadcast %9 : vector<4x1xf32> to vector<4x256xf32>
    %20 = arith.addf %18, %19 : vector<4x256xf32>
    %21 = arith.addf %1, %20 : vector<4x256xf32>
    %c1 = arith.constant 1 : index
    %c0_17 = arith.constant 0 : index
    %c0_18 = arith.constant 0 : index
    %22 = vector.load %arg3[%c1, %c0_17, %c0_18] : memref<2x8x4xf32, #tpu.memory_space<vmem>>, vector<1x8x4xf32>
    %23 = vector.shape_cast %22 : vector<1x8x4xf32> to vector<8x4xf32>
    %c1_19 = arith.constant 1 : index
    %c0_20 = arith.constant 0 : index
    %c0_21 = arith.constant 0 : index
    %24 = vector.load %arg4[%c1_19, %c0_20, %c0_21] : memref<2x8x1xf32, #tpu.memory_space<vmem>>, vector<1x8x1xf32>
    %25 = vector.shape_cast %24 : vector<1x8x1xf32> to vector<8x1xf32>
    %c1_22 = arith.constant 1 : index
    %c0_23 = arith.constant 0 : index
    %c0_24 = arith.constant 0 : index
    %26 = vector.load %arg5[%c1_22, %c0_23, %c0_24] : memref<2x4x8xf32, #tpu.memory_space<vmem>>, vector<1x4x8xf32>
    %27 = vector.shape_cast %26 : vector<1x4x8xf32> to vector<4x8xf32>
    %c1_25 = arith.constant 1 : index
    %c0_26 = arith.constant 0 : index
    %c0_27 = arith.constant 0 : index
    %28 = vector.load %arg6[%c1_25, %c0_26, %c0_27] : memref<2x4x1xf32, #tpu.memory_space<vmem>>, vector<1x4x1xf32>
    %29 = vector.shape_cast %28 : vector<1x4x1xf32> to vector<4x1xf32>
    %cst_28 = arith.constant dense<0.000000e+00> : vector<8x256xf32>
    %30 = tpu.matmul %23, %21, %cst_28 {dimension_numbers = #tpu.dot_dimension_numbers<[1], [0], [0], [1], [0, 0, 1, 1], [], []>} : vector<8x4xf32>, vector<4x256xf32>, vector<8x256xf32> -> vector<8x256xf32>
    %31 = vector.broadcast %25 : vector<8x1xf32> to vector<8x256xf32>
    %32 = arith.addf %30, %31 : vector<8x256xf32>
    %cst_29 = arith.constant 0.000000e+00 : f32
    %33 = vector.broadcast %cst_29 : f32 to vector<8x256xf32>
    %34 = arith.cmpf oge, %32, %33 : vector<8x256xf32>
    %cst_30 = arith.constant 1.000000e-01 : f32
    %35 = vector.broadcast %cst_30 : f32 to vector<8x256xf32>
    %36 = arith.mulf %35, %32 : vector<8x256xf32>
    %37 = arith.select %34, %32, %36 : vector<8x256xi1>, vector<8x256xf32>
    %cst_31 = arith.constant dense<0.000000e+00> : vector<4x256xf32>
    %38 = tpu.matmul %27, %37, %cst_31 {dimension_numbers = #tpu.dot_dimension_numbers<[1], [0], [0], [1], [0, 0, 1, 1], [], []>} : vector<4x8xf32>, vector<8x256xf32>, vector<4x256xf32> -> vector<4x256xf32>
    %39 = vector.broadcast %29 : vector<4x1xf32> to vector<4x256xf32>
    %40 = arith.addf %38, %39 : vector<4x256xf32>
    %41 = arith.addf %21, %40 : vector<4x256xf32>
    %c0_32 = arith.constant 0 : index
    %c0_33 = arith.constant 0 : index
    %c0_34 = arith.constant 0 : index
    %42 = vector.load %arg7[%c0_32, %c0_33, %c0_34] : memref<1x4x256xf32, #tpu.memory_space<vmem>>, vector<1x4x256xf32>
    %43 = vector.shape_cast %42 : vector<1x4x256xf32> to vector<4x256xf32>
    %44 = vector.shape_cast %41 : vector<4x256xf32> to vector<1x4x256xf32>
    tpu.vector_store %arg7[%c0_32, %c0_33, %c0_34], %44 {strides = array<i32>} : memref<1x4x256xf32, #tpu.memory_space<vmem>>, vector<1x4x256xf32>,
    return
  }
  func.func @transform_0(%arg0: i32, %arg1: i32) -> (i32, i32, i32) {
    %c0_i32 = arith.constant 0 : i32
    %c0_i32_0 = arith.constant 0 : i32
    return %arg0, %c0_i32, %arg1 : i32, i32, i32
  }
  func.func @transform_1(%arg0: i32, %arg1: i32) -> (i32, i32, i32) {
    %c0_i32 = arith.constant 0 : i32
    %c0_i32_0 = arith.constant 0 : i32
    %c0_i32_1 = arith.constant 0 : i32
    %c0_i32_2 = arith.constant 0 : i32
    return %c0_i32, %c0_i32_0, %c0_i32_1 : i32, i32, i32
  }
  func.func @transform_2(%arg0: i32, %arg1: i32) -> (i32, i32, i32) {
    %c0_i32 = arith.constant 0 : i32
    %c0_i32_0 = arith.constant 0 : i32
    %c0_i32_1 = arith.constant 0 : i32
    %c0_i32_2 = arith.constant 0 : i32
    return %c0_i32, %c0_i32_0, %c0_i32_1 : i32, i32, i32
  }
  func.func @transform_3(%arg0: i32, %arg1: i32) -> (i32, i32, i32) {
    %c0_i32 = arith.constant 0 : i32
    %c0_i32_0 = arith.constant 0 : i32
    %c0_i32_1 = arith.constant 0 : i32
    %c0_i32_2 = arith.constant 0 : i32
    return %c0_i32, %c0_i32_0, %c0_i32_1 : i32, i32, i32
  }
  func.func @transform_4(%arg0: i32, %arg1: i32) -> (i32, i32, i32) {
    %c0_i32 = arith.constant 0 : i32
    %c0_i32_0 = arith.constant 0 : i32
    %c0_i32_1 = arith.constant 0 : i32
    %c0_i32_2 = arith.constant 0 : i32
    return %c0_i32, %c0_i32_0, %c0_i32_1 : i32, i32, i32
  }
  func.func @transform_5(%arg0: i32, %arg1: i32) -> (i32, i32, i32) {
    %c0_i32 = arith.constant 0 : i32
    %c0_i32_0 = arith.constant 0 : i32
    return %arg0, %c0_i32, %arg1 : i32, i32, i32
  }
}

</mosaic_0001>

<llo_original>
// kernel: mlp_blocks_forward.1
$region0: #{mlp_blocks_forward.1}
  #allocation0 [shape = 'u32[]', space=smem, size = 0x4, offset = 0x4, fixed_abs, tag = 'smem constant byte address 0x4 - core index']
  #allocation1 [shape = 'u32[144,128]{1,0:T(1,128)}', space=vmem, size = 0x12000, scoped, tag = 'internal scratch']
  %s0 = inlined_call_operand.vmem [shape: f32[2,4,256], index: 0, kind: input, shape index: {}, may-alias: {0,5}]
  %s1 = inlined_call_operand.vmem [shape: f32[2,8,4], index: 1, kind: input, shape index: {}]
  %s2 = inlined_call_operand.vmem [shape: f32[2,8,1], index: 2, kind: input, shape index: {}]
  %s3 = inlined_call_operand.vmem [shape: f32[2,4,8], index: 3, kind: input, shape index: {}]
  %s4 = inlined_call_operand.vmem [shape: f32[2,4,1], index: 4, kind: input, shape index: {}]
  %s5 = inlined_call_operand.vmem [shape: f32[2,4,256], index: 5, kind: output, shape index: {}, may-alias: {0,5}]
  %s6 = sld [smem:[#allocation0]]
  $region53: #{mlp_blocks_forward.1} parent=0
    _
  %s8 = ssub.s32 1, %s6
  %s9 = scalar_select 0, %s8, %s6
  loop: start=0, step=1, limit=4
  $region2: #{mlp_blocks_forward.1} parent=0 // loop_pre_header
    _
  $region3: #{mlp_blocks_forward.1} parent=0 // loop_header
    %s11 = sphi 0, %s15
    %p12 = scmp.ge.s32.totalorder %s11, 4
    %s18 = sphi 0, %s30
    %s19 = sphi 0, %s26
    %s20 = sphi 0, %s18
    %s21 = sphi 0, %s19
    %s22 = sphi 0, %s20
    %s23 = sphi 0, %s21
    %s35 = sphi 0, %s37
    %s38 = sphi 0, %s35
    %s39 = sphi 0, %s38
    %s55 = sphi 0, %s39
    %s59 = sphi 0, %s59
    %s61 = sphi 0, %s59
    %s62 = sphi 0, %s61
    %s76 = sphi 0, %s62
    %s80 = sphi 0, %s80
    %s82 = sphi 0, %s80
    %s83 = sphi 0, %s82
    %s97 = sphi 0, %s83
    %s101 = sphi 0, %s101
    %s103 = sphi 0, %s101
    %s104 = sphi 0, %s103
    %s118 = sphi 0, %s104
    %s122 = sphi 0, %s122
    %s124 = sphi 0, %s122
    %s125 = sphi 0, %s124
    %s139 = sphi 0, %s125
    %s147 = sphi 0, %s149
    %s150 = sphi 0, %s147
    %s151 = sphi 0, %s150
    %s167 = sphi 0, %s151
  $region4: #{mlp_blocks_forward.1} parent=0 // loop_header_branch
    %14 = sbr.rel (%p12) target = $region8
  $region5: #{mlp_blocks_forward.1} parent=0 // loop_body
    %s16 = ssub.s32 %s11, 1
    %s17 = ssub.s32 %s11, 2
    %s24 = sadd.s32 1, %s19
    %p25 = scmp.ge.s32.totalorder %s24, 1
    %s26 = scalar_select %p25, 0, %s24
    %s27 = sadd.s32 1, %s18
    %s28 = scalar_select %p25, %s27, %s18
    %p29 = scmp.ge.s32.totalorder %s28, 2
    %s30 = scalar_select %p29, 0, %s28
    %s31 = ssub.s32 %s18, %s30
    %s32 = ssub.s32 %s19, %s26
    %s33 = sor.u32 %s31, %s32
    %p34 = scmp.eq.s32.totalorder %s33, 0
    %s36 = sadd.s32 %s35, 1
    %s37 = scalar_select %p34, %s35, %s36
    %p40 = pneg %p34
    %p41 = scmp.eq.s32.totalorder %s11, 1
    %p42 = por %p40, %p41
    %p43 = scmp.ne.s32.totalorder %s35, %s38
    %p44 = scmp.eq.s32.totalorder %s11, 0
    %p45 = por %p43, %p44
    %p46 = scmp.ne.s32.totalorder %s35, %s38
    %p47 = scmp.eq.s32.totalorder %s16, 1
    %p48 = por %p46, %p47
    %p49 = scmp.ne.s32.totalorder %s38, %s39
    %p50 = scmp.eq.s32.totalorder %s16, 0
    %p51 = por %p49, %p50
    %p52 = scmp.ne.s32.totalorder %s38, %s39
    %p53 = scmp.eq.s32.totalorder %s17, 1
    %p54 = por %p52, %p53
    %p56 = scmp.ne.s32.totalorder %s39, %s55
    %p57 = scmp.eq.s32.totalorder %s17, 0
    %p58 = por %p56, %p57
    %s60 = sadd.s32 %s59, 1
    %p63 = scmp.eq.s32.totalorder %s11, 1
    %p64 = scmp.ne.s32.totalorder %s59, %s61
    %p65 = scmp.eq.s32.totalorder %s11, 0
    %p66 = por %p64, %p65
    %p67 = scmp.ne.s32.totalorder %s59, %s61
    %p68 = scmp.eq.s32.totalorder %s16, 1
    %p69 = por %p67, %p68
    %p70 = scmp.ne.s32.totalorder %s61, %s62
    %p71 = scmp.eq.s32.totalorder %s16, 0
    %p72 = por %p70, %p71
    %p73 = scmp.ne.s32.totalorder %s61, %s62
    %p74 = scmp.eq.s32.totalorder %s17, 1
    %p75 = por %p73, %p74
    %p77 = scmp.ne.s32.totalorder %s62, %s76
    %p78 = scmp.eq.s32.totalorder %s17, 0
    %p79 = por %p77, %p78
    %s81 = sadd.s32 %s80, 1
    %p84 = scmp.eq.s32.totalorder %s11, 1
    %p85 = scmp.ne.s32.totalorder %s80, %s82
    %p86 = scmp.eq.s32.totalorder %s11, 0
    %p87 = por %p85, %p86
    %p88 = scmp.ne.s32.totalorder %s80, %s82
    %p89 = scmp.eq.s32.totalorder %s16, 1
    %p90 = por %p88, %p89
    %p91 = scmp.ne.s32.totalorder %s82, %s83
    %p92 = scmp.eq.s32.totalorder %s16, 0
    %p93 = por %p91, %p92
    %p94 = scmp.ne.s32.totalorder %s82, %s83
    %p95 = scmp.eq.s32.totalorder %s17, 1
    %p96 = por %p94, %p95
    %p98 = scmp.ne.s32.totalorder %s83, %s97
    %p99 = scmp.eq.s32.totalorder %s17, 0
    %p100 = por %p98, %p99
    %s102 = sadd.s32 %s101, 1
    %p105 = scmp.eq.s32.totalorder %s11, 1
    %p106 = scmp.ne.s32.totalorder %s101, %s103
    %p107 = scmp.eq.s32.totalorder %s11, 0
    %p108 = por %p106, %p107
    %p109 = scmp.ne.s32.totalorder %s101, %s103
    %p110 = scmp.eq.s32.totalorder %s16, 1
    %p111 = por %p109, %p110
    %p112 = scmp.ne.s32.totalorder %s103, %s104
    %p113 = scmp.eq.s32.totalorder %s16, 0
    %p114 = por %p112, %p113
    %p115 = scmp.ne.s32.totalorder %s103, %s104
    %p116 = scmp.eq.s32.totalorder %s17, 1
    %p117 = por %p115, %p116
    %p119 = scmp.ne.s32.totalorder %s104, %s118
    %p120 = scmp.eq.s32.totalorder %s17, 0
    %p121 = por %p119, %p120
    %s123 = sadd.s32 %s122, 1
    %p126 = scmp.eq.s32.totalorder %s11, 1
    %p127 = scmp.ne.s32.totalorder %s122, %s124
    %p128 = scmp.eq.s32.totalorder %s11, 0
    %p129 = por %p127, %p128
    %p130 = scmp.ne.s32.totalorder %s122, %s124
    %p131 = scmp.eq.s32.totalorder %s16, 1
    %p132 = por %p130, %p131
    %p133 = scmp.ne.s32.totalorder %s124, %s125
    %p134 = scmp.eq.s32.totalorder %s16, 0
    %p135 = por %p133, %p134
    %p136 = scmp.ne.s32.totalorder %s124, %s125
    %p137 = scmp.eq.s32.totalorder %s17, 1
    %p138 = por %p136, %p137
    %p140 = scmp.ne.s32.totalorder %s125, %s139
    %p141 = scmp.eq.s32.totalorder %s17, 0
    %p142 = por %p140, %p141
    %s143 = ssub.s32 %s18, %s30
    %s144 = ssub.s32 %s19, %s26
    %s145 = sor.u32 %s143, %s144
    %p146 = scmp.eq.s32.totalorder %s145, 0
    %s148 = sadd.s32 %s147, 1
    %s149 = scalar_select %p146, %s147, %s148
    %p152 = pneg %p146
    %p153 = scmp.eq.s32.totalorder %s11, 1
    %p154 = por %p152, %p153
    %p155 = scmp.ne.s32.totalorder %s147, %s150
    %p156 = scmp.eq.s32.totalorder %s11, 0
    %p157 = por %p155, %p156
    %p158 = scmp.ne.s32.totalorder %s147, %s150
    %p159 = scmp.eq.s32.totalorder %s16, 1
    %p160 = por %p158, %p159
    %p161 = scmp.ne.s32.totalorder %s150, %s151
    %p162 = scmp.eq.s32.totalorder %s16, 0
    %p163 = por %p161, %p162
    %p164 = scmp.ne.s32.totalorder %s150, %s151
    %p165 = scmp.eq.s32.totalorder %s17, 1
    %p166 = por %p164, %p165
    %p168 = scmp.ne.s32.totalorder %s151, %s167
    %p169 = scmp.eq.s32.totalorder %s17, 0
    %p170 = por %p168, %p169
    %p171 = scmp.le.s32.totalorder 1, %s11
    %p172 = scmp.lt.s32.totalorder %s11, 3
    %p173 = pnand %p171, %p172
    %p174 = pneg %p173
    // Predicated region
    $region9: #{mlp_blocks_forward.1} parent=5 // pred_check
      _
    $region10: #{mlp_blocks_forward.1} parent=5 // pred_check_branch
      %176 = sbr.rel (%p173) target = $region12
    $region11: #{mlp_blocks_forward.1} parent=5 // pred_region
      %s177 = ssub.s32 %s11, 1
      // Predicated region
      $region13: #{mlp_blocks_forward.1} parent=11 // pred_check
        %p178 = pneg %p72
      $region14: #{mlp_blocks_forward.1} parent=11 // pred_check_branch
        %180 = sbr.rel (%p178) target = $region16
      $region15: #{mlp_blocks_forward.1} parent=11 // pred_region
        _
      $region16: #{mlp_blocks_forward.1} parent=11 // pred_fallthru
        _
      // Predicated region
      $region17: #{mlp_blocks_forward.1} parent=11 // pred_check
        %p181 = pneg %p93
      $region18: #{mlp_blocks_forward.1} parent=11 // pred_check_branch
        %183 = sbr.rel (%p181) target = $region20
      $region19: #{mlp_blocks_forward.1} parent=11 // pred_region
        _
      $region20: #{mlp_blocks_forward.1} parent=11 // pred_fallthru
        _
      // Predicated region
      $region21: #{mlp_blocks_forward.1} parent=11 // pred_check
        %p184 = pneg %p114
      $region22: #{mlp_blocks_forward.1} parent=11 // pred_check_branch
        %186 = sbr.rel (%p184) target = $region24
      $region23: #{mlp_blocks_forward.1} parent=11 // pred_region
        _
      $region24: #{mlp_blocks_forward.1} parent=11 // pred_fallthru
        _
      // Predicated region
      $region25: #{mlp_blocks_forward.1} parent=11 // pred_check
        %p187 = pneg %p135
      $region26: #{mlp_blocks_forward.1} parent=11 // pred_check_branch
        %189 = sbr.rel (%p187) target = $region28
      $region27: #{mlp_blocks_forward.1} parent=11 // pred_region
        _
      $region28: #{mlp_blocks_forward.1} parent=11 // pred_fallthru
        _
    $region12: #{mlp_blocks_forward.1} parent=5 // pred_fallthru
      _
    %p190 = scmp.lt.s32.totalorder %s11, 2
    // Predicated region
    $region29: #{mlp_blocks_forward.1} parent=5 // pred_check
      %p191 = pneg %p190
    $region30: #{mlp_blocks_forward.1} parent=5 // pred_check_branch
      %193 = sbr.rel (%p191) target = $region32
    $region31: #{mlp_blocks_forward.1} parent=5 // pred_region
      // Predicated region
      $region33: #{mlp_blocks_forward.1} parent=31 // pred_check
        %p194 = pneg %p45
      $region34: #{mlp_blocks_forward.1} parent=31 // pred_check_branch
        %196 = sbr.rel (%p194) target = $region36
      $region35: #{mlp_blocks_forward.1} parent=31 // pred_region
        %s197 = smul.u32 2, %s19
        %p198 = scmp.lt.s32.totalorder %s18, 1
        %s199 = scalar_select %p198, %s18, 1
        %p200 = scmp.lt.s32.totalorder %s197, 1
        %s201 = scalar_select %p200, %s197, 1
        %s202 = smul.addr %s199, 2
        %s203 = sadd.s32 %s201, %s202
        %s204 = smul.addr %s203, 4
        %s205 = scalar_lea.vmem %s0, %s204
        %s206 = smul.u32 2, %s19
      $region36: #{mlp_blocks_forward.1} parent=31 // pred_fallthru
        _
    $region32: #{mlp_blocks_forward.1} parent=5 // pred_fallthru
      _
    %p207 = scmp.le.s32.totalorder 1, %s11
    %p208 = scmp.lt.s32.totalorder %s11, 3
    %p209 = pnand %p207, %p208
    %p210 = pneg %p209
    // Predicated region
    $region37: #{mlp_blocks_forward.1} parent=5 // pred_check
      _
    $region38: #{mlp_blocks_forward.1} parent=5 // pred_check_branch
      %212 = sbr.rel (%p209) target = $region40
    $region39: #{mlp_blocks_forward.1} parent=5 // pred_region
      %s213 = ssub.s32 %s11, 1
      %s214 = smul.u32 2, %s21
      %p215 = scmp.lt.s32.totalorder %s20, 1
      %s216 = scalar_select %p215, %s20, 1
      %p217 = scmp.lt.s32.totalorder %s214, 1
      %s218 = scalar_select %p217, %s214, 1
      %s219 = smul.addr %s216, 2
      %s220 = sadd.s32 %s218, %s219
      %s221 = smul.addr %s220, 4
      %s222 = scalar_lea.vmem %s0, %s221
      %p223 = pneg %p51
      %p224 = pneg %p48
      %p225 = pneg %p72
      %p226 = pneg %p69
      %p227 = pneg %p93
      %p228 = pneg %p90
      %p229 = pneg %p114
      %p230 = pneg %p111
      %p231 = pneg %p135
      %p232 = pneg %p132
      %p233 = pneg %p163
      %p234 = pneg %p160
      %s235 = smul.u32 2, %s21
      %p236 = scmp.lt.s32.totalorder %s20, 1
      %s237 = scalar_select %p236, %s20, 1
      %p238 = scmp.lt.s32.totalorder %s235, 1
      %s239 = scalar_select %p238, %s235, 1
      %s240 = smul.addr %s237, 2
      %s241 = sadd.s32 %s239, %s240
      %s242 = smul.addr %s241, 4
      %s243 = scalar_lea.vmem %s5, %s242
      %s244 = smul.u32 2, %s21
      %p245 = scmp.lt.s32.totalorder %s20, 1
      %s246 = scalar_select %p245, %s20, 1
      %p247 = scmp.lt.s32.totalorder %s244, 1
      %s248 = scalar_select %p247, %s244, 1
      %s249 = smul.addr %s246, 2
      %s250 = sadd.s32 %s248, %s249
      %s251 = smul.addr %s250, 4
      %s252 = scalar_lea.vmem %s0, %s251
      %s253 = smul.u32 2, %s21
      %s254 = smul.u32 2, %s21
      %p255 = scmp.lt.s32.totalorder %s20, 1
      %s256 = scalar_select %p255, %s20, 1
      %p257 = scmp.lt.s32.totalorder %s254, 1
      %s258 = scalar_select %p257, %s254, 1
      %s259 = smul.addr %s256, 2
      %s260 = sadd.s32 %s258, %s259
      %s261 = smul.addr %s260, 4
      %s262 = scalar_lea.vmem %s5, %s261
      %s263 = smul.u32 2, %s21
      %v264 = vld [vmem:[%s252] sm:$0xff]
      %v265 = vld [vmem:[%s1] sm:$0xff]
      %v266 = vld [vmem:[%s2] sm:$0xff]
      %v267 = vld [vmem:[%s3] sm:$0xf]
      %v268 = vld [vmem:[%s4] sm:$0xf]
      %270 = vset.pattern.permute.xlu0 0
      %271 = vperm.xlu0 %270, %v266
      %v272 = vpop.permute.xlu0 %271
      %v275 = vcombine.high %v264, %v264
      %vm276 = vcmask 31744
      %v278 = vsel %vm276, %v265, 0
      %vm280 = vcmask 1043456
      %v281 = vsel %vm280, %v264, 0
      %v283 = vsel %vm280, %v275, 0
      %285 = vmatprep.subr.mxu0 %v283
      %286 = vmatpush1.msra.mxu0 %v281
      %287 = vmatprep.subr.mxu0 0.0
      %288 = vmatpush1.msra.mxu0 0.0
      %289 = vmatprep.subr.mxu0 0.0
      %290 = vmatpush1.msra.mxu0 0.0
      %291 = vmatprep.subr.mxu0 0.0
      %292 = vmatpush1.msra.mxu0 0.0
      %293 = vmatprep.subr.mxu0 0.0
      %294 = vmatpush1.msra.mxu0 0.0
      %295 = vmatprep.subr.mxu0 0.0
      %296 = vmatpush1.msra.mxu0 0.0
      %297 = vmatprep.subr.mxu0 0.0
      %298 = vmatpush1.msra.mxu0 0.0
      %299 = vmatprep.subr.mxu0 0.0
      %300 = vmatpush1.msra.mxu0 0.0
      %301 = vmatprep.subr.mxu0 0.0
      %302 = vmatpush1.msra.mxu0 0.0
      %303 = vmatprep.subr.mxu0 0.0
      %304 = vmatpush1.msra.mxu0 0.0
      %305 = vmatprep.subr.mxu0 0.0
      %306 = vmatpush1.msra.mxu0 0.0
      %307 = vmatprep.subr.mxu0 0.0
      %308 = vmatpush1.msra.mxu0 0.0
      %309 = vmatprep.subr.mxu0 0.0
      %310 = vmatpush1.msra.mxu0 0.0
      %311 = vmatprep.subr.mxu0 0.0
      %312 = vmatpush1.msra.mxu0 0.0
      %313 = vmatprep.subr.mxu0 0.0
      %314 = vmatpush1.msra.mxu0 0.0
      %315 = vmatprep.subr.mxu0 0.0
      %316 = vmatpush1.msra.mxu0 0.0
      %317 = vmatprep.subr.mxu0 0.0
      %318 = vmatpush1.msra.mxu0 0.0
      %319 = vmatprep.subr.mxu0 0.0
      %320 = vmatpush1.msra.mxu0 0.0
      %321 = vmatprep.subr.mxu0 0.0
      %322 = vmatpush1.msra.mxu0 0.0
      %323 = vmatprep.subr.mxu0 0.0
      %324 = vmatpush1.msra.mxu0 0.0
      %325 = vmatprep.subr.mxu0 0.0
      %326 = vmatpush1.msra.mxu0 0.0
      %327 = vmatprep.subr.mxu0 0.0
      %328 = vmatpush1.msra.mxu0 0.0
      %329 = vmatprep.subr.mxu0 0.0
      %330 = vmatpush1.msra.mxu0 0.0
      %331 = vmatprep.subr.mxu0 0.0
      %332 = vmatpush1.msra.mxu0 0.0
      %333 = vmatprep.subr.mxu0 0.0
      %334 = vmatpush1.msra.mxu0 0.0
      %335 = vmatprep.subr.mxu0 0.0
      %336 = vmatpush1.msra.mxu0 0.0
      %337 = vmatprep.subr.mxu0 0.0
      %338 = vmatpush1.msra.mxu0 0.0
      %339 = vmatprep.subr.mxu0 0.0
      %340 = vmatpush1.msra.mxu0 0.0
      %341 = vmatprep.subr.mxu0 0.0
      %342 = vmatpush1.msra.mxu0 0.0
      %343 = vmatprep.subr.mxu0 0.0
      %344 = vmatpush1.msra.mxu0 0.0
      %345 = vmatprep.subr.mxu0 0.0
      %346 = vmatpush1.msra.mxu0 0.0
      %347 = vmatprep.subr.mxu0 0.0
      %348 = vmatpush1.msra.mxu0 0.0
      %349 = vmatprep.mubr.f32.mxu0 0.0
      %350 = vmatmul.mubr.f32.gmra.mrb[0].mxu0 %v278
      %v351 = vpop.f32.mrb[0].mxu0
      %v352 = vadd.f32 %v272, %v351
      %v353 = vpop.f32.mrb[0].mxu0
      %v354 = vadd.f32 %v272, %v353
      %355 = vdwg.mxu0
      %vm356 = vcmp.ge.f32.partialorder %v352, 0.0
      %vm357 = vcmp.ge.f32.partialorder %v354, 0.0
      %v358 = vmul.f32 %v352, 0.1
      %v359 = vmul.f32 %v354, 0.1
      %v360 = vsel %vm356, %v352, %v358
      %v361 = vsel %vm357, %v354, %v359
      %363 = vset.pattern.permute.xlu0 0
      %364 = vperm.xlu0 %363, %v268
      %v365 = vpop.permute.xlu0 %364
      %vm367 = vcmask 64512
      %v369 = vsel %vm367, %v267, 0
      %371 = vmatprep.subr.mxu0 %v361
      %372 = vmatpush1.msra.mxu0 %v360
      %373 = vmatprep.subr.mxu0 0.0
      %374 = vmatpush1.msra.mxu0 0.0
      %375 = vmatprep.subr.mxu0 0.0
      %376 = vmatpush1.msra.mxu0 0.0
      %377 = vmatprep.subr.mxu0 0.0
      %378 = vmatpush1.msra.mxu0 0.0
      %379 = vmatprep.subr.mxu0 0.0
      %380 = vmatpush1.msra.mxu0 0.0
      %381 = vmatprep.subr.mxu0 0.0
      %382 = vmatpush1.msra.mxu0 0.0
      %383 = vmatprep.subr.mxu0 0.0
      %384 = vmatpush1.msra.mxu0 0.0
      %385 = vmatprep.subr.mxu0 0.0
      %386 = vmatpush1.msra.mxu0 0.0
      %387 = vmatprep.subr.mxu0 0.0
      %388 = vmatpush1.msra.mxu0 0.0
      %389 = vmatprep.subr.mxu0 0.0
      %390 = vmatpush1.msra.mxu0 0.0
      %391 = vmatprep.subr.mxu0 0.0
      %392 = vmatpush1.msra.mxu0 0.0
      %393 = vmatprep.subr.mxu0 0.0
      %394 = vmatpush1.msra.mxu0 0.0
      %395 = vmatprep.subr.mxu0 0.0
      %396 = vmatpush1.msra.mxu0 0.0
      %397 = vmatprep.subr.mxu0 0.0
      %398 = vmatpush1.msra.mxu0 0.0
      %399 = vmatprep.subr.mxu0 0.0
      %400 = vmatpush1.msra.mxu0 0.0
      %401 = vmatprep.subr.mxu0 0.0
      %402 = vmatpush1.msra.mxu0 0.0
      %403 = vmatprep.subr.mxu0 0.0
      %404 = vmatpush1.msra.mxu0 0.0
      %405 = vmatprep.subr.mxu0 0.0
      %406 = vmatpush1.msra.mxu0 0.0
      %407 = vmatprep.subr.mxu0 0.0
      %408 = vmatpush1.msra.mxu0 0.0
      %409 = vmatprep.subr.mxu0 0.0
      %410 = vmatpush1.msra.mxu0 0.0
      %411 = vmatprep.subr.mxu0 0.0
      %412 = vmatpush1.msra.mxu0 0.0
      %413 = vmatprep.subr.mxu0 0.0
      %414 = vmatpush1.msra.mxu0 0.0
      %415 = vmatprep.subr.mxu0 0.0
      %416 = vmatpush1.msra.mxu0 0.0
      %417 = vmatprep.subr.mxu0 0.0
      %418 = vmatpush1.msra.mxu0 0.0
      %419 = vmatprep.subr.mxu0 0.0
      %420 = vmatpush1.msra.mxu0 0.0
      %421 = vmatprep.subr.mxu0 0.0
      %422 = vmatpush1.msra.mxu0 0.0
      %423 = vmatprep.subr.mxu0 0.0
      %424 = vmatpush1.msra.mxu0 0.0
      %425 = vmatprep.subr.mxu0 0.0
      %426 = vmatpush1.msra.mxu0 0.0
      %427 = vmatprep.subr.mxu0 0.0
      %428 = vmatpush1.msra.mxu0 0.0
      %429 = vmatprep.subr.mxu0 0.0
      %430 = vmatpush1.msra.mxu0 0.0
      %431 = vmatprep.subr.mxu0 0.0
      %432 = vmatpush1.msra.mxu0 0.0
      %433 = vmatprep.subr.mxu0 0.0
      %434 = vmatpush1.msra.mxu0 0.0
      %435 = vmatprep.mubr.f32.mxu0 0.0
      %436 = vmatmul.mubr.f32.gmra.mrb[0].mxu0 %v369
      %v437 = vpop.f32.mrb[0].mxu0
      %v438 = vadd.f32 %v365, %v437
      %v439 = vpop.f32.mrb[0].mxu0
      %v440 = vadd.f32 %v365, %v439
      %441 = vdwg.mxu0
      %v444 = vcombine.low %v438, %v440
      %v446 = vadd.f32 %v264, %v444
      %s447 = scalar_lea.vmem %s1, 8
      %v448 = vld [vmem:[%s447] sm:$0xff]
      %s449 = scalar_lea.vmem %s2, 8
      %v450 = vld [vmem:[%s449] sm:$0xff]
      %s451 = scalar_lea.vmem %s3, 4
      %v452 = vld [vmem:[%s451] sm:$0xf]
      %s453 = scalar_lea.vmem %s4, 4
      %v454 = vld [vmem:[%s453] sm:$0xf]
      %456 = vset.pattern.permute.xlu0 0
      %457 = vperm.xlu0 %456, %v450
      %v458 = vpop.permute.xlu0 %457
      %v461 = vcombine.high %v446, %v446
      %v463 = vsel %vm276, %v448, 0
      %v465 = vsel %vm280, %v446, 0
      %v467 = vsel %vm280, %v461, 0
      %469 = vmatprep.subr.mxu0 %v467
      %470 = vmatpush1.msra.mxu0 %v465
      %471 = vmatprep.subr.mxu0 0.0
      %472 = vmatpush1.msra.mxu0 0.0
      %473 = vmatprep.subr.mxu0 0.0
      %474 = vmatpush1.msra.mxu0 0.0
      %475 = vmatprep.subr.mxu0 0.0
      %476 = vmatpush1.msra.mxu0 0.0
      %477 = vmatprep.subr.mxu0 0.0
      %478 = vmatpush1.msra.mxu0 0.0
      %479 = vmatprep.subr.mxu0 0.0
      %480 = vmatpush1.msra.mxu0 0.0
      %481 = vmatprep.subr.mxu0 0.0
      %482 = vmatpush1.msra.mxu0 0.0
      %483 = vmatprep.subr.mxu0 0.0
      %484 = vmatpush1.msra.mxu0 0.0
      %485 = vmatprep.subr.mxu0 0.0
      %486 = vmatpush1.msra.mxu0 0.0
      %487 = vmatprep.subr.mxu0 0.0
      %488 = vmatpush1.msra.mxu0 0.0
      %489 = vmatprep.subr.mxu0 0.0
      %490 = vmatpush1.msra.mxu0 0.0
      %491 = vmatprep.subr.mxu0 0.0
      %492 = vmatpush1.msra.mxu0 0.0
      %493 = vmatprep.subr.mxu0 0.0
      %494 = vmatpush1.msra.mxu0 0.0
      %495 = vmatprep.subr.mxu0 0.0
      %496 = vmatpush1.msra.mxu0 0.0
      %497 = vmatprep.subr.mxu0 0.0
      %498 = vmatpush1.msra.mxu0 0.0
      %499 = vmatprep.subr.mxu0 0.0
      %500 = vmatpush1.msra.mxu0 0.0
      %501 = vmatprep.subr.mxu0 0.0
      %502 = vmatpush1.msra.mxu0 0.0
      %503 = vmatprep.subr.mxu0 0.0
      %504 = vmatpush1.msra.mxu0 0.0
      %505 = vmatprep.subr.mxu0 0.0
      %506 = vmatpush1.msra.mxu0 0.0
      %507 = vmatprep.subr.mxu0 0.0
      %508 = vmatpush1.msra.mxu0 0.0
      %509 = vmatprep.subr.mxu0 0.0
      %510 = vmatpush1.msra.mxu0 0.0
      %511 = vmatprep.subr.mxu0 0.0
      %512 = vmatpush1.msra.mxu0 0.0
      %513 = vmatprep.subr.mxu0 0.0
      %514 = vmatpush1.msra.mxu0 0.0
      %515 = vmatprep.subr.mxu0 0.0
      %516 = vmatpush1.msra.mxu0 0.0
      %517 = vmatprep.subr.mxu0 0.0
      %518 = vmatpush1.msra.mxu0 0.0
      %519 = vmatprep.subr.mxu0 0.0
      %520 = vmatpush1.msra.mxu0 0.0
      %521 = vmatprep.subr.mxu0 0.0
      %522 = vmatpush1.msra.mxu0 0.0
      %523 = vmatprep.subr.mxu0 0.0
      %524 = vmatpush1.msra.mxu0 0.0
      %525 = vmatprep.subr.mxu0 0.0
      %526 = vmatpush1.msra.mxu0 0.0
      %527 = vmatprep.subr.mxu0 0.0
      %528 = vmatpush1.msra.mxu0 0.0
      %529 = vmatprep.subr.mxu0 0.0
      %530 = vmatpush1.msra.mxu0 0.0
      %531 = vmatprep.subr.mxu0 0.0
      %532 = vmatpush1.msra.mxu0 0.0
      %533 = vmatprep.mubr.f32.mxu0 0.0
      %534 = vmatmul.mubr.f32.gmra.mrb[0].mxu0 %v463
      %v535 = vpop.f32.mrb[0].mxu0
      %v536 = vadd.f32 %v458, %v535
      %v537 = vpop.f32.mrb[0].mxu0
      %v538 = vadd.f32 %v458, %v537
      %539 = vdwg.mxu0
      %vm540 = vcmp.ge.f32.partialorder %v536, 0.0
      %vm541 = vcmp.ge.f32.partialorder %v538, 0.0
      %v542 = vmul.f32 %v536, 0.1
      %v543 = vmul.f32 %v538, 0.1
      %v544 = vsel %vm540, %v536, %v542
      %v545 = vsel %vm541, %v538, %v543
      %547 = vset.pattern.permute.xlu0 0
      %548 = vperm.xlu0 %547, %v454
      %v549 = vpop.permute.xlu0 %548
      %v552 = vsel %vm367, %v452, 0
      %554 = vmatprep.subr.mxu0 %v545
      %555 = vmatpush1.msra.mxu0 %v544
      %556 = vmatprep.subr.mxu0 0.0
      %557 = vmatpush1.msra.mxu0 0.0
      %558 = vmatprep.subr.mxu0 0.0
      %559 = vmatpush1.msra.mxu0 0.0
      %560 = vmatprep.subr.mxu0 0.0
      %561 = vmatpush1.msra.mxu0 0.0
      %562 = vmatprep.subr.mxu0 0.0
      %563 = vmatpush1.msra.mxu0 0.0
      %564 = vmatprep.subr.mxu0 0.0
      %565 = vmatpush1.msra.mxu0 0.0
      %566 = vmatprep.subr.mxu0 0.0
      %567 = vmatpush1.msra.mxu0 0.0
      %568 = vmatprep.subr.mxu0 0.0
      %569 = vmatpush1.msra.mxu0 0.0
      %570 = vmatprep.subr.mxu0 0.0
      %571 = vmatpush1.msra.mxu0 0.0
      %572 = vmatprep.subr.mxu0 0.0
      %573 = vmatpush1.msra.mxu0 0.0
      %574 = vmatprep.subr.mxu0 0.0
      %575 = vmatpush1.msra.mxu0 0.0
      %576 = vmatprep.subr.mxu0 0.0
      %577 = vmatpush1.msra.mxu0 0.0
      %578 = vmatprep.subr.mxu0 0.0
      %579 = vmatpush1.msra.mxu0 0.0
      %580 = vmatprep.subr.mxu0 0.0
      %581 = vmatpush1.msra.mxu0 0.0
      %582 = vmatprep.subr.mxu0 0.0
      %583 = vmatpush1.msra.mxu0 0.0
      %584 = vmatprep.subr.mxu0 0.0
      %585 = vmatpush1.msra.mxu0 0.0
      %586 = vmatprep.subr.mxu0 0.0
      %587 = vmatpush1.msra.mxu0 0.0
      %588 = vmatprep.subr.mxu0 0.0
      %589 = vmatpush1.msra.mxu0 0.0
      %590 = vmatprep.subr.mxu0 0.0
      %591 = vmatpush1.msra.mxu0 0.0
      %592 = vmatprep.subr.mxu0 0.0
      %593 = vmatpush1.msra.mxu0 0.0
      %594 = vmatprep.subr.mxu0 0.0
      %595 = vmatpush1.msra.mxu0 0.0
      %596 = vmatprep.subr.mxu0 0.0
      %597 = vmatpush1.msra.mxu0 0.0
      %598 = vmatprep.subr.mxu0 0.0
      %599 = vmatpush1.msra.mxu0 0.0
      %600 = vmatprep.subr.mxu0 0.0
      %601 = vmatpush1.msra.mxu0 0.0
      %602 = vmatprep.subr.mxu0 0.0
      %603 = vmatpush1.msra.mxu0 0.0
      %604 = vmatprep.subr.mxu0 0.0
      %605 = vmatpush1.msra.mxu0 0.0
      %606 = vmatprep.subr.mxu0 0.0
      %607 = vmatpush1.msra.mxu0 0.0
      %608 = vmatprep.subr.mxu0 0.0
      %609 = vmatpush1.msra.mxu0 0.0
      %610 = vmatprep.subr.mxu0 0.0
      %611 = vmatpush1.msra.mxu0 0.0
      %612 = vmatprep.subr.mxu0 0.0
      %613 = vmatpush1.msra.mxu0 0.0
      %614 = vmatprep.subr.mxu0 0.0
      %615 = vmatpush1.msra.mxu0 0.0
      %616 = vmatprep.subr.mxu0 0.0
      %617 = vmatpush1.msra.mxu0 0.0
      %618 = vmatprep.mubr.f32.mxu0 0.0
      %619 = vmatmul.mubr.f32.gmra.mrb[0].mxu0 %v552
      %v620 = vpop.f32.mrb[0].mxu0
      %v621 = vadd.f32 %v549, %v620
      %v622 = vpop.f32.mrb[0].mxu0
      %v623 = vadd.f32 %v549, %v622
      %624 = vdwg.mxu0
      %v627 = vcombine.low %v621, %v623
      %v629 = vadd.f32 %v446, %v627
      %630 = vst [vmem:[%s262] sm:$0xff] %v629
      %s631 = smul.u32 2, %s21
      %p632 = scmp.lt.s32.totalorder %s20, 1
      %s633 = scalar_select %p632, %s20, 1
      %p634 = scmp.lt.s32.totalorder %s631, 1
      %s635 = scalar_select %p634, %s631, 1
      %s636 = smul.addr %s633, 2
      %s637 = sadd.s32 %s635, %s636
      %s638 = smul.addr %s637, 4
      %s639 = scalar_lea.vmem %s5, %s638
      // Predicated region
      $region41: #{mlp_blocks_forward.1} parent=39 // pred_check
        %p640 = pneg %p160
      $region42: #{mlp_blocks_forward.1} parent=39 // pred_check_branch
        %642 = sbr.rel (%p640) target = $region44
      $region43: #{mlp_blocks_forward.1} parent=39 // pred_region
        %s643 = smul.u32 2, %s21
      $region44: #{mlp_blocks_forward.1} parent=39 // pred_fallthru
        _
    $region40: #{mlp_blocks_forward.1} parent=5 // pred_fallthru
      _
    %p644 = scmp.le.s32.totalorder 2, %s11
    // Predicated region
    $region45: #{mlp_blocks_forward.1} parent=5 // pred_check
      %p645 = pneg %p644
    $region46: #{mlp_blocks_forward.1} parent=5 // pred_check_branch
      %647 = sbr.rel (%p645) target = $region48
    $region47: #{mlp_blocks_forward.1} parent=5 // pred_region
      %s648 = ssub.s32 %s11, 2
      // Predicated region
      $region49: #{mlp_blocks_forward.1} parent=47 // pred_check
        %p649 = pneg %p166
      $region50: #{mlp_blocks_forward.1} parent=47 // pred_check_branch
        %651 = sbr.rel (%p649) target = $region52
      $region51: #{mlp_blocks_forward.1} parent=47 // pred_region
        %s652 = smul.u32 2, %s23
        %p653 = scmp.lt.s32.totalorder %s22, 1
        %s654 = scalar_select %p653, %s22, 1
        %p655 = scmp.lt.s32.totalorder %s652, 1
        %s656 = scalar_select %p655, %s652, 1
        %s657 = smul.addr %s654, 2
        %s658 = sadd.s32 %s656, %s657
        %s659 = smul.addr %s658, 4
        %s660 = scalar_lea.vmem %s5, %s659
      $region52: #{mlp_blocks_forward.1} parent=47 // pred_fallthru
        _
    $region48: #{mlp_blocks_forward.1} parent=5 // pred_fallthru
      _
  $region6: #{mlp_blocks_forward.1} parent=0 // loop_footer
    %s15 = sadd.s32 1, %s11
  $region7: #{mlp_blocks_forward.1} parent=0 // loop_footer_branch
    %10 = sbr.rel target = $region3
  $region8: #{mlp_blocks_forward.1} parent=0 // loop_exit
    _

</llo_original>
